<compile_context>
chip_gen: v5e
topology: v5e:2x2
jax: 0.10.0
libtpu: 0.0.40
codegen_flags: <defaults>
</compile_context>

<pallas_src>
import functools

import jax
import jax.numpy as jnp
from jax.experimental import pallas as pl
from jax.experimental.pallas import tpu as pltpu


def _round8(v):
    return ((v + 7) // 8) * 8


def _slab_layout(f_in, hidden):
    """Sublane-8-aligned row offsets of each parameter inside the packed slab."""
    row_w1 = 0
    row_att1 = row_w1 + _round8(f_in)
    row_b1 = row_att1 + _round8(2 * hidden)
    row_w2 = row_b1 + 8
    row_att2 = row_w2 + _round8(2 * hidden)
    row_b2 = row_att2 + 8
    rows = row_b2 + 8
    return {"w1": row_w1, "att1": row_att1, "b1": row_b1,
            "w2": row_w2, "att2": row_att2, "b2": row_b2, "rows": rows}


def _build_att_matrix(a_src, a_dst, heads, f_out):
    """Block-diag (heads*f_out, 2*heads); cols [src_0..src_{H-1}, dst_0..dst_{H-1}]."""
    a = jnp.zeros((heads * f_out, 2 * heads), jnp.float32)
    for h in range(heads):
        a = a.at[h * f_out:(h + 1) * f_out, h].set(a_src[h])
        a = a.at[h * f_out:(h + 1) * f_out, heads + h].set(a_dst[h])
    return a


def _gat_attention_block(xh, att_mat, mask_bias, *, heads, f_out,
                         negative_slope, approx_recip):
    """Masked multi-head attention + aggregation for one GAT layer.

    xh        : (N, heads*f_out) f32 -- already-projected node features
    att_mat   : (heads*f_out, 2*heads) f32, cols [src..., dst...] (block diagonal)
    mask_bias : (N, N) f32 additive mask (0 on edges, -1e30 elsewhere)
    returns   : (N, heads*f_out) f32 (heads concatenated; no bias / activation)
    """
    n = xh.shape[0]
    if att_mat.shape[0] == 1:
        # f_out == 1, heads == 1: the "dot products" degenerate to scalar scales.
        scores = xh * att_mat                                            # (N, 2)
    else:
        # All heads' <x', a_src>/<x', a_dst> in one bf16 MXU pass.
        scores = jnp.dot(xh.astype(jnp.bfloat16), att_mat.astype(jnp.bfloat16),
                         preferred_element_type=jnp.float32)             # (N, 2*heads)

    s_src_t = jnp.transpose(scores[:, :heads])          # (heads, N): ONE XLU transpose
    s_dst = scores[:, heads:2 * heads]                  # (N, heads)
    ones = jnp.ones((n, 1), jnp.bfloat16)

    outs = []
    for h in range(heads):                               # heads is 1 or 2 -> static unroll
        # e[i, j] = leaky_relu(s_dst[i] + s_src[j]) + mask_bias[i, j]   (all f32)
        e = s_dst[:, h:h + 1] + s_src_t[h:h + 1, :]                      # (N, N)
        e = jnp.maximum(e, negative_slope * e)                           # leaky relu
        e = e + mask_bias                                                # additive mask

        # Softmax over sources j (every row has a self-loop -> finite max).
        e_max = jnp.max(e, axis=-1, keepdims=True)
        p = jnp.exp(e - e_max).astype(jnp.bfloat16)                      # masked -> 0

        # Fold the denominator into the aggregation matmul: p @ [xh_h | 1]
        # gives both the aggregate and the row-sum in one MXU pass (f32 acc).
        xh_h = xh[:, h * f_out:(h + 1) * f_out].astype(jnp.bfloat16)     # (N, f_out)
        aug = jnp.concatenate([xh_h, ones], axis=-1)                     # (N, f_out+1)
        agg = jnp.dot(p, aug, preferred_element_type=jnp.float32)        # (N, f_out+1)
        denom = agg[:, f_out:f_out + 1]                                  # (N, 1)
        outs.append(agg[:, :f_out] * pl.reciprocal(denom, approx=approx_recip))

    return outs[0] if heads == 1 else jnp.concatenate(outs, axis=-1)


def _species_gat_kernel(x_ref, adj_ref, p_ref, out_ref, *,
                        f_in, hidden, layout, negative_slope=0.2):
    """Fused SpeciesGAT forward for one graph: sigmoid(GAT2(relu(GAT1(x))))."""
    x = x_ref[0]                                          # (N, F_in) f32
    adj = adj_ref[0].astype(jnp.float32)                  # (N, N) exact {0, 1}
    # Additive mask synthesized in-kernel (adjacency travels as bf16).
    mask_bias = (adj - 1.0) * jnp.float32(1e30)           # 0 on edges, -1e30 elsewhere

    h2w = 2 * hidden
    # Static, sublane-aligned slices of the single packed parameter slab.
    w1 = p_ref[layout["w1"]:layout["w1"] + f_in, :h2w]            # (F_in, 2H)
    att1 = p_ref[layout["att1"]:layout["att1"] + h2w, :4]         # (2H, 4)
    b1 = p_ref[layout["b1"]:layout["b1"] + 1, :h2w]               # (1, 2H)
    w2 = p_ref[layout["w2"]:layout["w2"] + h2w, :1]               # (2H, 1)
    att2 = p_ref[layout["att2"]:layout["att2"] + 1, :2]           # (1, 2)
    b2 = p_ref[layout["b2"]:layout["b2"] + 1, :1]                 # (1, 1)

    # ---- conv1: in_dim -> hidden, heads=2 (concat), then relu -----------------
    xh1 = jnp.dot(x.astype(jnp.bfloat16), w1.astype(jnp.bfloat16),
                  preferred_element_type=jnp.float32)             # (N, 2H)
    h1 = _gat_attention_block(xh1, att1, mask_bias, heads=2, f_out=hidden,
                              negative_slope=negative_slope, approx_recip=False)
    h1 = jnp.maximum(h1 + b1, 0.0)                                # bias once + relu

    # ---- conv2: 2*hidden -> 1, heads=1, then sigmoid ---------------------------
    xh2 = jnp.dot(h1.astype(jnp.bfloat16), w2.astype(jnp.bfloat16),
                  preferred_element_type=jnp.float32)             # (N, 1)
    h2 = _gat_attention_block(xh2, att2, mask_bias, heads=1, f_out=1,
                              negative_slope=negative_slope, approx_recip=True)
    out_ref[0] = jax.nn.sigmoid(h2 + b2)                          # (N, 1)


def _pack_param_slab(params):
    """Pack all layer parameters into one lane-aligned (rows, 128) f32 slab."""
    hidden = params["hidden"]
    f_in = params["w1"].shape[0]
    layout = _slab_layout(f_in, hidden)
    att1 = _build_att_matrix(params["a1_src"], params["a1_dst"], 2, hidden)  # (2H, 4)
    att2 = _build_att_matrix(params["a2_src"], params["a2_dst"], 1, 1)       # (1, 2)

    slab = jnp.zeros((layout["rows"], 128), jnp.float32)
    slab = slab.at[layout["w1"]:layout["w1"] + f_in, :2 * hidden].set(params["w1"])
    slab = slab.at[layout["att1"]:layout["att1"] + 2 * hidden, :4].set(att1)
    slab = slab.at[layout["b1"], :2 * hidden].set(params["b1"][0])
    slab = slab.at[layout["w2"]:layout["w2"] + 2 * hidden, 0].set(params["w2"][:, 0])
    slab = slab.at[layout["att2"], :2].set(att2[0])
    slab = slab.at[layout["b2"], 0].set(params["b2"][0, 0])
    return slab, layout, f_in


def species_gat_forward(x, adj, params):
    """Batched SpeciesGAT forward.

    x   : (B, N, F_in) f32
    adj : (B, N, N) {0,1} mask, adj[b, i, j] = 1 iff edge j -> i (self-loops included)
    returns (B, N, 1) f32
    """
    b, n, f_in_x = x.shape
    hidden = params["hidden"]
    slab, layout, f_in = _pack_param_slab(params)
    assert f_in == f_in_x

    kernel = functools.partial(_species_gat_kernel,
                               f_in=f_in, hidden=hidden, layout=layout)

    grid_spec = pltpu.PrefetchScalarGridSpec(
        num_scalar_prefetch=0,
        grid=(b,),
        in_specs=[
            pl.BlockSpec((1, n, f_in), lambda g: (g, 0, 0)),          # per-graph x
            pl.BlockSpec((1, n, n), lambda g: (g, 0, 0)),             # per-graph adj (bf16)
            pl.BlockSpec((layout["rows"], 128), lambda g: (0, 0)),    # VMEM-resident params
        ],
        out_specs=pl.BlockSpec((1, n, 1), lambda g: (g, 0, 0)),
    )

    return pl.pallas_call(
        kernel,
        out_shape=jax.ShapeDtypeStruct((b, n, 1), jnp.float32),
        grid_spec=grid_spec,
        compiler_params=pltpu.CompilerParams(
            dimension_semantics=("parallel",)),   # graphs shard across v7x's 2 TCs
    )(x, adj.astype(jnp.bfloat16), slab)


def make_params(key, in_dim, hidden):
    k = jax.random.split(key, 6)
    scale1 = 1.0 / jnp.sqrt(in_dim)
    scale2 = 1.0 / jnp.sqrt(2 * hidden)
    return {
        "hidden": hidden,
        # conv1: in_dim -> hidden, heads=2, concat -> 2*hidden
        "w1": jax.random.normal(k[0], (in_dim, 2 * hidden), jnp.float32) * scale1,
        "a1_src": jax.random.normal(k[1], (2, hidden), jnp.float32) * scale1,
        "a1_dst": jax.random.normal(k[2], (2, hidden), jnp.float32) * scale1,
        "b1": jnp.zeros((1, 2 * hidden), jnp.float32),
        # conv2: 2*hidden -> 1, heads=1
        "w2": jax.random.normal(k[3], (2 * hidden, 1), jnp.float32) * scale2,
        "a2_src": jax.random.normal(k[4], (1, 1), jnp.float32) * scale2,
        "a2_dst": jax.random.normal(k[5], (1, 1), jnp.float32) * scale2,
        "b2": jnp.zeros((1, 1), jnp.float32),
    }


# --- pure-JAX f32 reference (PyG GATConv math) for a sanity check ---------------
def _ref_layer(x, w, a_src, a_dst, bias, adj, heads, f_out, act):
    outs = []
    for h in range(heads):
        xh = x @ w[:, h * f_out:(h + 1) * f_out]
        s_src = jnp.sum(xh * a_src[h], -1, keepdims=True)
        s_dst = jnp.sum(xh * a_dst[h], -1, keepdims=True)
        e = s_dst + s_src.T
        e = jnp.where(e > 0, e, 0.2 * e)
        e = jnp.where(adj > 0.5, e, -1e30)
        alpha = jax.nn.softmax(e, axis=-1)
        outs.append(alpha @ xh + bias[:, h * f_out:(h + 1) * f_out])
    o = jnp.concatenate(outs, axis=-1)
    return jnp.maximum(o, 0.0) if act == "relu" else jax.nn.sigmoid(o)


def _ref_forward(x, adj, p):
    h = _ref_layer(x, p["w1"], p["a1_src"], p["a1_dst"], p["b1"], adj, 2, p["hidden"], "relu")
    return _ref_layer(h, p["w2"], p["a2_src"], p["a2_dst"], p["b2"], adj, 1, 1, "sigmoid")


if __name__ == "__main__":
    B, N, IN_DIM, HIDDEN = 8, 16, 8, 32
    key = jax.random.PRNGKey(0)
    kx, kp, ka = jax.random.split(key, 3)

    x = jax.random.normal(kx, (B, N, IN_DIM), jnp.float32)

    # Dense {0,1} adjacency per graph: adj[b, i, j] = 1 iff edge j -> i, with
    # self-loops (dense equivalent of PyG edge_index + add_self_loops=True).
    adj = (jax.random.uniform(ka, (B, N, N)) < 0.3).astype(jnp.float32)
    adj = jnp.maximum(adj, jnp.eye(N, dtype=jnp.float32)[None])

    params = make_params(kp, IN_DIM, HIDDEN)

    out = species_gat_forward(x, adj, params)
    out = jax.block_until_ready(out)
    assert out.shape == (B, N, 1), out.shape

    # Loosened tolerance vs. the f32 reference: the kernel feeds bf16 operands to
    # the MXU and uses the approximate EUP reciprocal in the final layer.
    ref = jax.vmap(lambda xb, ab: _ref_forward(xb, ab, params))(x, adj)
    max_err = float(jnp.max(jnp.abs(out - ref)))
    assert max_err < 5e-2, max_err

    print("KERNEL_OK")
</pallas_src>

<mosaic_0001>
module attributes {stable_mosaic.version = 11 : i64} {
  func.func @_species_gat_kernel(%arg0: i32, %arg1: memref<1x16x8xf32, #tpu.memory_space<vmem>>, %arg2: memref<1x16x16xbf16, #tpu.memory_space<vmem>>, %arg3: memref<160x128xf32, #tpu.memory_space<vmem>>, %arg4: memref<1x16x1xf32, #tpu.memory_space<vmem>>) attributes {dimension_semantics = [#tpu.dimension_semantics<parallel>], iteration_bounds = array<i64: 8>, scalar_prefetch = 0 : i64, scratch_operands = 0 : i64, tpu.core_type = #tpu.core_type<tc>, window_params = [{transform_indices = @transform_0, window_bounds = array<i64: 1, 16, 8>}, {transform_indices = @transform_1, window_bounds = array<i64: 1, 16, 16>}, {pipeline_mode = #tpu.pipeline_mode<synchronous>, transform_indices = @transform_2, window_bounds = array<i64: 160, 128>}, {transform_indices = @transform_3, window_bounds = array<i64: 1, 16, 1>}]} {
    %c0 = arith.constant 0 : index
    %c0_0 = arith.constant 0 : index
    %c0_1 = arith.constant 0 : index
    %0 = vector.load %arg1[%c0, %c0_0, %c0_1] : memref<1x16x8xf32, #tpu.memory_space<vmem>>, vector<1x16x8xf32>
    %1 = vector.shape_cast %0 : vector<1x16x8xf32> to vector<16x8xf32>
    %c0_2 = arith.constant 0 : index
    %c0_3 = arith.constant 0 : index
    %c0_4 = arith.constant 0 : index
    %2 = vector.load %arg2[%c0_2, %c0_3, %c0_4] : memref<1x16x16xbf16, #tpu.memory_space<vmem>>, vector<1x16x16xbf16>
    %3 = vector.shape_cast %2 : vector<1x16x16xbf16> to vector<16x16xbf16>
    %4 = arith.extf %3 : vector<16x16xbf16> to vector<16x16xf32>
    %cst = arith.constant 1.000000e+00 : f32
    %5 = vector.broadcast %cst : f32 to vector<16x16xf32>
    %6 = arith.subf %4, %5 : vector<16x16xf32>
    %cst_5 = arith.constant 1.000000e+30 : f32
    %7 = vector.broadcast %cst_5 : f32 to vector<16x16xf32>
    %8 = arith.mulf %6, %7 : vector<16x16xf32>
    %c0_6 = arith.constant 0 : index
    %c0_7 = arith.constant 0 : index
    %9 = vector.load %arg3[%c0_6, %c0_7] : memref<160x128xf32, #tpu.memory_space<vmem>>, vector<8x64xf32>
    %c8 = arith.constant 8 : index
    %c0_8 = arith.constant 0 : index
    %10 = vector.load %arg3[%c8, %c0_8] : memref<160x128xf32, #tpu.memory_space<vmem>>, vector<64x4xf32>
    %c72 = arith.constant 72 : index
    %c0_9 = arith.constant 0 : index
    %11 = vector.load %arg3[%c72, %c0_9] : memref<160x128xf32, #tpu.memory_space<vmem>>, vector<1x64xf32>
    %c80 = arith.constant 80 : index
    %c0_10 = arith.constant 0 : index
    %12 = vector.load %arg3[%c80, %c0_10] : memref<160x128xf32, #tpu.memory_space<vmem>>, vector<64x1xf32>
    %c144 = arith.constant 144 : index
    %c0_11 = arith.constant 0 : index
    %13 = vector.load %arg3[%c144, %c0_11] : memref<160x128xf32, #tpu.memory_space<vmem>>, vector<1x2xf32>
    %c152 = arith.constant 152 : index
    %c0_12 = arith.constant 0 : index
    %14 = vector.load %arg3[%c152, %c0_12] : memref<160x128xf32, #tpu.memory_space<vmem>>, vector<1x1xf32>
    %15 = arith.truncf %1 : vector<16x8xf32> to vector<16x8xbf16>
    %16 = arith.truncf %9 : vector<8x64xf32> to vector<8x64xbf16>
    %cst_13 = arith.constant dense<0.000000e+00> : vector<16x64xf32>
    %17 = tpu.matmul %15, %16, %cst_13 {dimension_numbers = #tpu.dot_dimension_numbers<[1], [0], [0], [1], [0, 0, 1, 1], [], []>} : vector<16x8xbf16>, vector<8x64xbf16>, vector<16x64xf32> -> vector<16x64xf32>
    %18 = arith.truncf %17 : vector<16x64xf32> to vector<16x64xbf16>
    %19 = arith.truncf %10 : vector<64x4xf32> to vector<64x4xbf16>
    %cst_14 = arith.constant dense<0.000000e+00> : vector<16x4xf32>
    %20 = tpu.matmul %18, %19, %cst_14 {dimension_numbers = #tpu.dot_dimension_numbers<[1], [0], [0], [1], [0, 0, 1, 1], [], []>} : vector<16x64xbf16>, vector<64x4xbf16>, vector<16x4xf32> -> vector<16x4xf32>
    %21 = vector.extract_strided_slice %20 {offsets = [0, 0], sizes = [16, 2], strides = [1, 1]} : vector<16x4xf32> to vector<16x2xf32>
    %22 = tpu.transpose %21, [1, 0] : vector<16x2xf32> -> vector<2x16xf32>
    %23 = vector.extract_strided_slice %20 {offsets = [0, 2], sizes = [16, 2], strides = [1, 1]} : vector<16x4xf32> to vector<16x2xf32>
    %cst_15 = arith.constant 1.000000e+00 : bf16
    %24 = vector.broadcast %cst_15 : bf16 to vector<16x1xbf16>
    %25 = vector.extract_strided_slice %23 {offsets = [0, 0], sizes = [16, 1], strides = [1, 1]} : vector<16x2xf32> to vector<16x1xf32>
    %26 = vector.extract_strided_slice %22 {offsets = [0, 0], sizes = [1, 16], strides = [1, 1]} : vector<2x16xf32> to vector<1x16xf32>
    %27 = vector.broadcast %25 : vector<16x1xf32> to vector<16x16xf32>
    %28 = vector.broadcast %26 : vector<1x16xf32> to vector<16x16xf32>
    %29 = arith.addf %27, %28 : vector<16x16xf32>
    %cst_16 = arith.constant 2.000000e-01 : f32
    %30 = vector.broadcast %cst_16 : f32 to vector<16x16xf32>
    %31 = arith.mulf %30, %29 : vector<16x16xf32>
    %32 = arith.maximumf %29, %31 : vector<16x16xf32>
    %33 = arith.addf %32, %8 : vector<16x16xf32>
    %cst_17 = arith.constant dense<0xFF800000> : vector<16xf32>
    %34 = vector.multi_reduction <maximumf>, %33, %cst_17 [1] : vector<16x16xf32> to vector<16xf32>
    %35 = vector.shape_cast %34 : vector<16xf32> to vector<16x1xf32>
    %36 = vector.broadcast %35 : vector<16x1xf32> to vector<16x16xf32>
    %37 = arith.subf %33, %36 : vector<16x16xf32>
    %38 = math.exp %37 : vector<16x16xf32>
    %39 = arith.truncf %38 : vector<16x16xf32> to vector<16x16xbf16>
    %40 = vector.extract_strided_slice %17 {offsets = [0, 0], sizes = [16, 32], strides = [1, 1]} : vector<16x64xf32> to vector<16x32xf32>
    %41 = arith.truncf %40 : vector<16x32xf32> to vector<16x32xbf16>
    %42 = tpu.concatenate %41, %24 in 1 : vector<16x32xbf16>, vector<16x1xbf16> -> vector<16x33xbf16>
    %cst_18 = arith.constant dense<0.000000e+00> : vector<16x33xf32>
    %43 = tpu.matmul %39, %42, %cst_18 {dimension_numbers = #tpu.dot_dimension_numbers<[1], [0], [0], [1], [0, 0, 1, 1], [], []>} : vector<16x16xbf16>, vector<16x33xbf16>, vector<16x33xf32> -> vector<16x33xf32>
    %44 = vector.extract_strided_slice %43 {offsets = [0, 32], sizes = [16, 1], strides = [1, 1]} : vector<16x33xf32> to vector<16x1xf32>
    %45 = vector.extract_strided_slice %43 {offsets = [0, 0], sizes = [16, 32], strides = [1, 1]} : vector<16x33xf32> to vector<16x32xf32>
    %46 = tpu.reciprocal %44 : vector<16x1xf32> -> vector<16x1xf32>
    %47 = vector.broadcast %46 : vector<16x1xf32> to vector<16x32xf32>
    %48 = arith.mulf %45, %47 : vector<16x32xf32>
    %49 = vector.extract_strided_slice %23 {offsets = [0, 1], sizes = [16, 1], strides = [1, 1]} : vector<16x2xf32> to vector<16x1xf32>
    %50 = vector.extract_strided_slice %22 {offsets = [1, 0], sizes = [1, 16], strides = [1, 1]} : vector<2x16xf32> to vector<1x16xf32>
    %51 = vector.broadcast %49 : vector<16x1xf32> to vector<16x16xf32>
    %52 = vector.broadcast %50 : vector<1x16xf32> to vector<16x16xf32>
    %53 = arith.addf %51, %52 : vector<16x16xf32>
    %cst_19 = arith.constant 2.000000e-01 : f32
    %54 = vector.broadcast %cst_19 : f32 to vector<16x16xf32>
    %55 = arith.mulf %54, %53 : vector<16x16xf32>
    %56 = arith.maximumf %53, %55 : vector<16x16xf32>
    %57 = arith.addf %56, %8 : vector<16x16xf32>
    %cst_20 = arith.constant dense<0xFF800000> : vector<16xf32>
    %58 = vector.multi_reduction <maximumf>, %57, %cst_20 [1] : vector<16x16xf32> to vector<16xf32>
    %59 = vector.shape_cast %58 : vector<16xf32> to vector<16x1xf32>
    %60 = vector.broadcast %59 : vector<16x1xf32> to vector<16x16xf32>
    %61 = arith.subf %57, %60 : vector<16x16xf32>
    %62 = math.exp %61 : vector<16x16xf32>
    %63 = arith.truncf %62 : vector<16x16xf32> to vector<16x16xbf16>
    %64 = vector.extract_strided_slice %17 {offsets = [0, 32], sizes = [16, 32], strides = [1, 1]} : vector<16x64xf32> to vector<16x32xf32>
    %65 = arith.truncf %64 : vector<16x32xf32> to vector<16x32xbf16>
    %66 = tpu.concatenate %65, %24 in 1 : vector<16x32xbf16>, vector<16x1xbf16> -> vector<16x33xbf16>
    %cst_21 = arith.constant dense<0.000000e+00> : vector<16x33xf32>
    %67 = tpu.matmul %63, %66, %cst_21 {dimension_numbers = #tpu.dot_dimension_numbers<[1], [0], [0], [1], [0, 0, 1, 1], [], []>} : vector<16x16xbf16>, vector<16x33xbf16>, vector<16x33xf32> -> vector<16x33xf32>
    %68 = vector.extract_strided_slice %67 {offsets = [0, 32], sizes = [16, 1], strides = [1, 1]} : vector<16x33xf32> to vector<16x1xf32>
    %69 = vector.extract_strided_slice %67 {offsets = [0, 0], sizes = [16, 32], strides = [1, 1]} : vector<16x33xf32> to vector<16x32xf32>
    %70 = tpu.reciprocal %68 : vector<16x1xf32> -> vector<16x1xf32>
    %71 = vector.broadcast %70 : vector<16x1xf32> to vector<16x32xf32>
    %72 = arith.mulf %69, %71 : vector<16x32xf32>
    %73 = tpu.concatenate %48, %72 in 1 : vector<16x32xf32>, vector<16x32xf32> -> vector<16x64xf32>
    %74 = vector.broadcast %11 : vector<1x64xf32> to vector<16x64xf32>
    %75 = arith.addf %73, %74 : vector<16x64xf32>
    %cst_22 = arith.constant 0.000000e+00 : f32
    %76 = vector.broadcast %cst_22 : f32 to vector<16x64xf32>
    %77 = arith.maximumf %75, %76 : vector<16x64xf32>
    %78 = arith.truncf %77 : vector<16x64xf32> to vector<16x64xbf16>
    %79 = arith.truncf %12 : vector<64x1xf32> to vector<64x1xbf16>
    %cst_23 = arith.constant dense<0.000000e+00> : vector<16x1xf32>
    %80 = tpu.matmul %78, %79, %cst_23 {dimension_numbers = #tpu.dot_dimension_numbers<[1], [0], [0], [1], [0, 0, 1, 1], [], []>} : vector<16x64xbf16>, vector<64x1xbf16>, vector<16x1xf32> -> vector<16x1xf32>
    %81 = vector.broadcast %80 : vector<16x1xf32> to vector<16x2xf32>
    %82 = vector.broadcast %13 : vector<1x2xf32> to vector<16x2xf32>
    %83 = arith.mulf %81, %82 : vector<16x2xf32>
    %84 = vector.extract_strided_slice %83 {offsets = [0, 0], sizes = [16, 1], strides = [1, 1]} : vector<16x2xf32> to vector<16x1xf32>
    %85 = tpu.transpose %84, [1, 0] : vector<16x1xf32> -> vector<1x16xf32>
    %86 = vector.extract_strided_slice %83 {offsets = [0, 1], sizes = [16, 1], strides = [1, 1]} : vector<16x2xf32> to vector<16x1xf32>
    %cst_24 = arith.constant 1.000000e+00 : bf16
    %87 = vector.broadcast %cst_24 : bf16 to vector<16x1xbf16>
    %88 = vector.broadcast %86 : vector<16x1xf32> to vector<16x16xf32>
    %89 = vector.broadcast %85 : vector<1x16xf32> to vector<16x16xf32>
    %90 = arith.addf %88, %89 : vector<16x16xf32>
    %cst_25 = arith.constant 2.000000e-01 : f32
    %91 = vector.broadcast %cst_25 : f32 to vector<16x16xf32>
    %92 = arith.mulf %91, %90 : vector<16x16xf32>
    %93 = arith.maximumf %90, %92 : vector<16x16xf32>
    %94 = arith.addf %93, %8 : vector<16x16xf32>
    %cst_26 = arith.constant dense<0xFF800000> : vector<16xf32>
    %95 = vector.multi_reduction <maximumf>, %94, %cst_26 [1] : vector<16x16xf32> to vector<16xf32>
    %96 = vector.shape_cast %95 : vector<16xf32> to vector<16x1xf32>
    %97 = vector.broadcast %96 : vector<16x1xf32> to vector<16x16xf32>
    %98 = arith.subf %94, %97 : vector<16x16xf32>
    %99 = math.exp %98 : vector<16x16xf32>
    %100 = arith.truncf %99 : vector<16x16xf32> to vector<16x16xbf16>
    %101 = arith.truncf %80 : vector<16x1xf32> to vector<16x1xbf16>
    %102 = tpu.concatenate %101, %87 in 1 : vector<16x1xbf16>, vector<16x1xbf16> -> vector<16x2xbf16>
    %cst_27 = arith.constant dense<0.000000e+00> : vector<16x2xf32>
    %103 = tpu.matmul %100, %102, %cst_27 {dimension_numbers = #tpu.dot_dimension_numbers<[1], [0], [0], [1], [0, 0, 1, 1], [], []>} : vector<16x16xbf16>, vector<16x2xbf16>, vector<16x2xf32> -> vector<16x2xf32>
    %104 = vector.extract_strided_slice %103 {offsets = [0, 1], sizes = [16, 1], strides = [1, 1]} : vector<16x2xf32> to vector<16x1xf32>
    %105 = vector.extract_strided_slice %103 {offsets = [0, 0], sizes = [16, 1], strides = [1, 1]} : vector<16x2xf32> to vector<16x1xf32>
    %106 = tpu.reciprocal %104 {approx = true} : vector<16x1xf32> -> vector<16x1xf32>
    %107 = arith.mulf %105, %106 : vector<16x1xf32>
    %108 = vector.broadcast %14 : vector<1x1xf32> to vector<16x1xf32>
    %109 = arith.addf %107, %108 : vector<16x1xf32>
    %110 = arith.negf %109 : vector<16x1xf32>
    %111 = math.exp %110 : vector<16x1xf32>
    %cst_28 = arith.constant 1.000000e+00 : f32
    %112 = vector.broadcast %cst_28 : f32 to vector<16x1xf32>
    %113 = arith.addf %112, %111 : vector<16x1xf32>
    %114 = arith.divf %112, %113 : vector<16x1xf32>
    %c0_29 = arith.constant 0 : index
    %c0_30 = arith.constant 0 : index
    %c0_31 = arith.constant 0 : index
    %115 = vector.load %arg4[%c0_29, %c0_30, %c0_31] : memref<1x16x1xf32, #tpu.memory_space<vmem>>, vector<1x16x1xf32>
    %116 = vector.shape_cast %115 : vector<1x16x1xf32> to vector<16x1xf32>
    %117 = vector.shape_cast %114 : vector<16x1xf32> to vector<1x16x1xf32>
    tpu.vector_store %arg4[%c0_29, %c0_30, %c0_31], %117 {strides = array<i32>} : memref<1x16x1xf32, #tpu.memory_space<vmem>>, vector<1x16x1xf32>,
    return
  }
  func.func @transform_0(%arg0: i32) -> (i32, i32, i32) {
    %c0_i32 = arith.constant 0 : i32
    %c0_i32_0 = arith.constant 0 : i32
    %c0_i32_1 = arith.constant 0 : i32
    return %arg0, %c0_i32, %c0_i32_0 : i32, i32, i32
  }
  func.func @transform_1(%arg0: i32) -> (i32, i32, i32) {
    %c0_i32 = arith.constant 0 : i32
    %c0_i32_0 = arith.constant 0 : i32
    %c0_i32_1 = arith.constant 0 : i32
    return %arg0, %c0_i32, %c0_i32_0 : i32, i32, i32
  }
  func.func @transform_2(%arg0: i32) -> (i32, i32) {
    %c0_i32 = arith.constant 0 : i32
    %c0_i32_0 = arith.constant 0 : i32
    %c0_i32_1 = arith.constant 0 : i32
    return %c0_i32, %c0_i32_0 : i32, i32
  }
  func.func @transform_3(%arg0: i32) -> (i32, i32, i32) {
    %c0_i32 = arith.constant 0 : i32
    %c0_i32_0 = arith.constant 0 : i32
    %c0_i32_1 = arith.constant 0 : i32
    return %arg0, %c0_i32, %c0_i32_0 : i32, i32, i32
  }
}

</mosaic_0001>

<llo_original>
// kernel: tpu_custom_call.1
$region0: #{tpu_custom_call.1}
  #allocation0 [shape = 'u32[]', space=smem, size = 0x4, offset = 0x4, fixed_abs, tag = 'smem constant byte address 0x4 - core index']
  #allocation1 [shape = 'u32[72,128]{1,0:T(1,128)}', space=vmem, size = 0x9000, scoped, tag = 'internal scratch']
  %s0 = inlined_call_operand.vmem [shape: f32[8,16,8], index: 0, kind: input, shape index: {}]
  %s1 = inlined_call_operand.hbm [shape: bf16[8,16,16], index: 1, kind: input, shape index: {}]
  %s2 = inlined_call_operand.vmem [shape: f32[160,128], index: 2, kind: input, shape index: {}]
  %s3 = inlined_call_operand.vmem [shape: f32[8,16,1], index: 3, kind: output, shape index: {}]
  %s4 = sld [smem:[#allocation0]]
  $region49: #{tpu_custom_call.1} parent=0
    _
  %s6 = ssub.s32 1, %s4
  %s7 = scalar_select 0, %s6, %s4
  $region1: #{tpu_custom_call.1} parent=0
    #allocation2 [shape = 'u8[8192]{0}', space=vmem, size = 0x2000, scoped, tag = 'input window, operand 1']
    #allocation3 [shape = 's32[2]{0}', space=sflag, size = 0x8, scoped, tag = 'scoped memory for tpu_custom_call.1']
    %8 = vsyncpa [#allocation3], 0
    %s9 = scalar_lea.sflag [#allocation3], 1
    %10 = vsyncpa %s9, 0
    loop: start=0, step=1, limit=10
    $region2: #{tpu_custom_call.1} parent=1 // loop_pre_header
      _
    $region3: #{tpu_custom_call.1} parent=1 // loop_header
      %s12 = sphi 0, %s16
      %p13 = scmp.ge.s32.totalorder %s12, 10
      %s22 = sphi 0, %s24
      %s25 = sphi 0, %s22
      %s26 = sphi 0, %s25
      %s42 = sphi 0, %s26
      %s48 = sphi 0, %s50
      %s51 = sphi 0, %s48
      %s52 = sphi 0, %s51
      %s68 = sphi 0, %s52
      %s72 = sphi 0, %s72
      %s74 = sphi 0, %s72
      %s75 = sphi 0, %s74
      %s89 = sphi 0, %s75
      %s95 = sphi 0, %s97
      %s98 = sphi 0, %s95
      %s99 = sphi 0, %s98
      %s115 = sphi 0, %s99
    $region4: #{tpu_custom_call.1} parent=1 // loop_header_branch
      %15 = sbr.rel (%p13) target = $region8
    $region5: #{tpu_custom_call.1} parent=1 // loop_body
      %s17 = ssub.s32 %s12, 1
      %s18 = ssub.s32 %s12, 2
      %s19 = sadd.s32 %s12, 1
      %s20 = ssub.s32 %s12, %s19
      %p21 = scmp.eq.s32.totalorder %s20, 0
      %s23 = sadd.s32 %s22, 1
      %s24 = scalar_select %p21, %s22, %s23
      %p27 = pneg %p21
      %p28 = scmp.eq.s32.totalorder %s12, 7
      %p29 = por %p27, %p28
      %p30 = scmp.ne.s32.totalorder %s22, %s25
      %p31 = scmp.eq.s32.totalorder %s12, 0
      %p32 = por %p30, %p31
      %p33 = scmp.ne.s32.totalorder %s22, %s25
      %p34 = scmp.eq.s32.totalorder %s17, 7
      %p35 = por %p33, %p34
      %p36 = scmp.ne.s32.totalorder %s25, %s26
      %p37 = scmp.eq.s32.totalorder %s17, 0
      %p38 = por %p36, %p37
      %p39 = scmp.ne.s32.totalorder %s25, %s26
      %p40 = scmp.eq.s32.totalorder %s18, 7
      %p41 = por %p39, %p40
      %p43 = scmp.ne.s32.totalorder %s26, %s42
      %p44 = scmp.eq.s32.totalorder %s18, 0
      %p45 = por %p43, %p44
      %s46 = ssub.s32 %s12, %s19
      %p47 = scmp.eq.s32.totalorder %s46, 0
      %s49 = sadd.s32 %s48, 1
      %s50 = scalar_select %p47, %s48, %s49
      %p53 = pneg %p47
      %p54 = scmp.eq.s32.totalorder %s12, 7
      %p55 = por %p53, %p54
      %p56 = scmp.ne.s32.totalorder %s48, %s51
      %p57 = scmp.eq.s32.totalorder %s12, 0
      %p58 = por %p56, %p57
      %p59 = scmp.ne.s32.totalorder %s48, %s51
      %p60 = scmp.eq.s32.totalorder %s17, 7
      %p61 = por %p59, %p60
      %p62 = scmp.ne.s32.totalorder %s51, %s52
      %p63 = scmp.eq.s32.totalorder %s17, 0
      %p64 = por %p62, %p63
      %p65 = scmp.ne.s32.totalorder %s51, %s52
      %p66 = scmp.eq.s32.totalorder %s18, 7
      %p67 = por %p65, %p66
      %p69 = scmp.ne.s32.totalorder %s52, %s68
      %p70 = scmp.eq.s32.totalorder %s18, 0
      %p71 = por %p69, %p70
      %s73 = sadd.s32 %s72, 1
      %p76 = scmp.eq.s32.totalorder %s12, 7
      %p77 = scmp.ne.s32.totalorder %s72, %s74
      %p78 = scmp.eq.s32.totalorder %s12, 0
      %p79 = por %p77, %p78
      %p80 = scmp.ne.s32.totalorder %s72, %s74
      %p81 = scmp.eq.s32.totalorder %s17, 7
      %p82 = por %p80, %p81
      %p83 = scmp.ne.s32.totalorder %s74, %s75
      %p84 = scmp.eq.s32.totalorder %s17, 0
      %p85 = por %p83, %p84
      %p86 = scmp.ne.s32.totalorder %s74, %s75
      %p87 = scmp.eq.s32.totalorder %s18, 7
      %p88 = por %p86, %p87
      %p90 = scmp.ne.s32.totalorder %s75, %s89
      %p91 = scmp.eq.s32.totalorder %s18, 0
      %p92 = por %p90, %p91
      %s93 = ssub.s32 %s12, %s19
      %p94 = scmp.eq.s32.totalorder %s93, 0
      %s96 = sadd.s32 %s95, 1
      %s97 = scalar_select %p94, %s95, %s96
      %p100 = pneg %p94
      %p101 = scmp.eq.s32.totalorder %s12, 7
      %p102 = por %p100, %p101
      %p103 = scmp.ne.s32.totalorder %s95, %s98
      %p104 = scmp.eq.s32.totalorder %s12, 0
      %p105 = por %p103, %p104
      %p106 = scmp.ne.s32.totalorder %s95, %s98
      %p107 = scmp.eq.s32.totalorder %s17, 7
      %p108 = por %p106, %p107
      %p109 = scmp.ne.s32.totalorder %s98, %s99
      %p110 = scmp.eq.s32.totalorder %s17, 0
      %p111 = por %p109, %p110
      %p112 = scmp.ne.s32.totalorder %s98, %s99
      %p113 = scmp.eq.s32.totalorder %s18, 7
      %p114 = por %p112, %p113
      %p116 = scmp.ne.s32.totalorder %s99, %s115
      %p117 = scmp.eq.s32.totalorder %s18, 0
      %p118 = por %p116, %p117
      %p119 = scmp.le.s32.totalorder 1, %s12
      %p120 = scmp.lt.s32.totalorder %s12, 9
      %p121 = pnand %p119, %p120
      %p122 = pneg %p121
      // Predicated region
      $region9: #{tpu_custom_call.1} parent=5 // pred_check
        _
      $region10: #{tpu_custom_call.1} parent=5 // pred_check_branch
        %124 = sbr.rel (%p121) target = $region12
      $region11: #{tpu_custom_call.1} parent=5 // pred_region
        %s125 = ssub.s32 %s12, 1
        // Predicated region
        $region13: #{tpu_custom_call.1} parent=11 // pred_check
          %p126 = pneg %p85
        $region14: #{tpu_custom_call.1} parent=11 // pred_check_branch
          %128 = sbr.rel (%p126) target = $region16
        $region15: #{tpu_custom_call.1} parent=11 // pred_region
          _
        $region16: #{tpu_custom_call.1} parent=11 // pred_fallthru
          _
      $region12: #{tpu_custom_call.1} parent=5 // pred_fallthru
        _
      %p129 = scmp.lt.s32.totalorder %s12, 8
      // Predicated region
      $region17: #{tpu_custom_call.1} parent=5 // pred_check
        %p130 = pneg %p129
      $region18: #{tpu_custom_call.1} parent=5 // pred_check_branch
        %132 = sbr.rel (%p130) target = $region20
      $region19: #{tpu_custom_call.1} parent=5 // pred_region
        // Predicated region
        $region21: #{tpu_custom_call.1} parent=19 // pred_check
          %p133 = pneg %p32
        $region22: #{tpu_custom_call.1} parent=19 // pred_check_branch
          %135 = sbr.rel (%p133) target = $region24
        $region23: #{tpu_custom_call.1} parent=19 // pred_region
          %p136 = scmp.lt.s32.totalorder %s12, 7
          %s137 = scalar_select %p136, %s12, 7
          %s138 = smul.addr %s137, 2
          %s139 = smul.addr %s138, 8
          %s140 = scalar_lea.vmem %s0, %s139
        $region24: #{tpu_custom_call.1} parent=19 // pred_fallthru
          _
        // Predicated region
        $region25: #{tpu_custom_call.1} parent=19 // pred_check
          %p141 = pneg %p58
        $region26: #{tpu_custom_call.1} parent=19 // pred_check_branch
          %143 = sbr.rel (%p141) target = $region28
        $region27: #{tpu_custom_call.1} parent=19 // pred_region
          %s144 = sand.u32 %s48, 1
          %s145 = scalar_lea.sflag [#allocation3], %s144
          %s146 = sand.u32 %s48, 1
          %s147 = smul.addr %s146, 8
          %s148 = scalar_lea.vmem [#allocation2], %s147
          %150 = vsyncadd %s145, 0
          %s151 = smul.addr %s12, 2
          %s152 = smul.addr %s151, 4
          %s153 = scalar_lea.hbm %s1, %s152
          %s154 = sshll.u32 %s153, 4
          %s155 = int_to_ptr.hbm [resolvable:$true] %s154
          %s156 = sshll.u32 %s148, 4
          %s157 = int_to_ptr.vmem [resolvable:$true] %s156
          %162 = dma.hbm_to_vmem [thread:$0]  %s155, 128, %s157, %s145, 64, 64, 4
        $region28: #{tpu_custom_call.1} parent=19 // pred_fallthru
          _
      $region20: #{tpu_custom_call.1} parent=5 // pred_fallthru
        _
      %p163 = scmp.le.s32.totalorder 1, %s12
      %p164 = scmp.lt.s32.totalorder %s12, 9
      %p165 = pnand %p163, %p164
      %p166 = pneg %p165
      // Predicated region
      $region29: #{tpu_custom_call.1} parent=5 // pred_check
        _
      $region30: #{tpu_custom_call.1} parent=5 // pred_check_branch
        %168 = sbr.rel (%p165) target = $region32
      $region31: #{tpu_custom_call.1} parent=5 // pred_region
        %s169 = ssub.s32 %s12, 1
        %s170 = sand.u32 %s51, 1
        %s171 = scalar_lea.sflag [#allocation3], %s170
        %s172 = sand.u32 %s51, 1
        %s173 = smul.addr %s172, 8
        %s174 = scalar_lea.vmem [#allocation2], %s173
        // Predicated region
        $region33: #{tpu_custom_call.1} parent=31 // pred_check
          %p175 = pneg %p64
        $region34: #{tpu_custom_call.1} parent=31 // pred_check_branch
          %177 = sbr.rel (%p175) target = $region36
        $region35: #{tpu_custom_call.1} parent=31 // pred_region
          %179 = dma.done %s171, 128
        $region36: #{tpu_custom_call.1} parent=31 // pred_fallthru
          _
        %p180 = scmp.lt.s32.totalorder %s17, 7
        %s181 = scalar_select %p180, %s17, 7
        %s182 = smul.addr %s181, 2
        %s183 = smul.addr %s182, 8
        %s184 = scalar_lea.vmem %s0, %s183
        %p185 = pneg %p38
        %p186 = pneg %p35
        %s187 = sand.u32 %s51, 1
        %s188 = scalar_lea.sflag [#allocation3], %s187
        %s189 = sand.u32 %s51, 1
        %s190 = smul.addr %s189, 8
        %s191 = scalar_lea.vmem [#allocation2], %s190
        %p192 = pneg %p64
        %p193 = pneg %p61
        %p194 = pneg %p85
        %p195 = pneg %p82
        %p196 = pneg %p111
        %p197 = pneg %p108
        %p198 = scmp.lt.s32.totalorder %s17, 7
        %s199 = scalar_select %p198, %s17, 7
        %s200 = smul.addr %s199, 2
        %s201 = smul.addr %s200, 8
        %s202 = scalar_lea.vmem %s3, %s201
        %p203 = scmp.lt.s32.totalorder %s17, 7
        %s204 = scalar_select %p203, %s17, 7
        %s205 = smul.addr %s204, 2
        %s206 = smul.addr %s205, 8
        %s207 = scalar_lea.vmem %s0, %s206
        %p208 = scmp.lt.s32.totalorder %s17, 7
        %s209 = scalar_select %p208, %s17, 7
        %s210 = smul.addr %s209, 2
        %s211 = smul.addr %s210, 8
        %s212 = scalar_lea.vmem %s3, %s211
        %v215 = vld [vmem:[%s207] sm:$0xff]
        %v216 = vld [vmem:[%s207 + $0x8] sm:$0xff]
        %v217 = vld [vmem:[%s174] sm:$0xf]
        %v218 = vld [vmem:[%s174 + $0x4] sm:$0xf]
        %v219 = vunpack.c.l.bf16 %v217
        %v220 = vunpack.c.l.bf16 %v218
        %v221 = vsub.f32 %v219, 1.0
        %v222 = vsub.f32 %v220, 1.0
        %v223 = vmul.f32 %v221, 1e+30
        %v224 = vmul.f32 %v222, 1e+30
        %v225 = vld [vmem:[%s2] sm:$0xff]
        %v226 = vld [vmem:[%s2 + $0x8] sm:$0xff]
        %v227 = vld [vmem:[%s2 + $0x10] sm:$0xff]
        %v228 = vld [vmem:[%s2 + $0x18] sm:$0xff]
        %v229 = vld [vmem:[%s2 + $0x20] sm:$0xff]
        %v230 = vld [vmem:[%s2 + $0x28] sm:$0xff]
        %v231 = vld [vmem:[%s2 + $0x30] sm:$0xff]
        %v232 = vld [vmem:[%s2 + $0x38] sm:$0xff]
        %v233 = vld [vmem:[%s2 + $0x40] sm:$0xff]
        %v234 = vld [vmem:[%s2 + $0x48] sm:$0x1]
        %v235 = vld [vmem:[%s2 + $0x50] sm:$0xff]
        %v236 = vld [vmem:[%s2 + $0x58] sm:$0xff]
        %v237 = vld [vmem:[%s2 + $0x60] sm:$0xff]
        %v238 = vld [vmem:[%s2 + $0x68] sm:$0xff]
        %v239 = vld [vmem:[%s2 + $0x70] sm:$0xff]
        %v240 = vld [vmem:[%s2 + $0x78] sm:$0xff]
        %v241 = vld [vmem:[%s2 + $0x80] sm:$0xff]
        %v242 = vld [vmem:[%s2 + $0x88] sm:$0xff]
        %v243 = vld [vmem:[%s2 + $0x90] sm:$0x1]
        %v244 = vld [vmem:[%s2 + $0x98] sm:$0x1]
        %v245 = vpack.c.bf16 %v216, %v215
        %v246 = vpack.c.bf16 %v225, %v225
        %vm247 = vcmask 64512
        %v249 = vsel %vm247, %v245, 0
        %vm251 = vcmask 1043456
        %v253 = vsel %vm251, %v246, 0
        %255 = vmatpush.bf16.msra.mxu0 0
        %256 = vmatpush.bf16.msra.mxu0 0
        %257 = vmatpush.bf16.msra.mxu0 0
        %258 = vmatpush.bf16.msra.mxu0 0
        %259 = vmatpush.bf16.msra.mxu0 0
        %260 = vmatpush.bf16.msra.mxu0 0
        %261 = vmatpush.bf16.msra.mxu0 0
        %262 = vmatpush.bf16.msra.mxu0 %v253
        %263 = vmatmul.bf16.gmra.mxu0 %v249
        %v264 = vpop.f32.mrf.mxu0
        %v265 = vadd.f32 0.0, %v264
        %v266 = vpop.f32.mrf.mxu0
        %v267 = vadd.f32 0.0, %v266
        %268 = vdwg.mxu0
        %v269 = vpack.c.bf16 %v267, %v265
        %v270 = vpack.c.bf16 %v227, %v226
        %v271 = vpack.c.bf16 %v229, %v228
        %v272 = vpack.c.bf16 %v231, %v230
        %v273 = vpack.c.bf16 %v233, %v232
        %vm274 = vcmask 523264
        %v276 = vsel %vm274, %v269, 0
        %278 = vmatpush.bf16.msra.mxu0 0
        %279 = vmatpush.bf16.msra.mxu0 0
        %280 = vmatpush.bf16.msra.mxu0 0
        %281 = vmatpush.bf16.msra.mxu0 0
        %282 = vmatpush.bf16.msra.mxu0 %v273
        %283 = vmatpush.bf16.msra.mxu0 %v272
        %284 = vmatpush.bf16.msra.mxu0 %v271
        %285 = vmatpush.bf16.msra.mxu0 %v270
        %286 = vmatmul.bf16.gmra.mxu0 %v276
        %v287 = vpop.f32.mrf.mxu0
        %v288 = vadd.f32 0.0, %v287
        %v289 = vpop.f32.mrf.mxu0
        %v290 = vadd.f32 0.0, %v289
        %291 = vdwg.mxu0
        %292 = vxpose.xlu0.b32.start [1/16] %v288, 128
        %293 = vxpose.xlu0.b32.cont [2/16] %v290, 128
        %294 = vxpose.xlu0.b32.cont [3/16] 0.0, 128
        %295 = vxpose.xlu0.b32.cont [4/16] 0.0, 128
        %296 = vxpose.xlu0.b32.cont [5/16] 0.0, 128
        %297 = vxpose.xlu0.b32.cont [6/16] 0.0, 128
        %298 = vxpose.xlu0.b32.cont [7/16] 0.0, 128
        %299 = vxpose.xlu0.b32.cont [8/16] 0.0, 128
        %300 = vxpose.xlu0.b32.cont [9/16] 0.0, 128
        %301 = vxpose.xlu0.b32.cont [10/16] 0.0, 128
        %302 = vxpose.xlu0.b32.cont [11/16] 0.0, 128
        %303 = vxpose.xlu0.b32.cont [12/16] 0.0, 128
        %304 = vxpose.xlu0.b32.cont [13/16] 0.0, 128
        %305 = vxpose.xlu0.b32.cont [14/16] 0.0, 128
        %306 = vxpose.xlu0.b32.cont [15/16] 0.0, 128
        %307 = vxpose.xlu0.b32.end [16/16] 0.0, 128
        %v308 = vpop.trf.xlu0
        %v309 = vpop.trf.xlu0
        %v310 = vpop.trf.xlu0
        %v311 = vpop.trf.xlu0
        %v312 = vpop.trf.xlu0
        %v313 = vpop.trf.xlu0
        %v314 = vpop.trf.xlu0
        %v315 = vpop.trf.xlu0
        %v316 = vpop.trf.xlu0
        %v317 = vpop.trf.xlu0
        %v318 = vpop.trf.xlu0
        %v319 = vpop.trf.xlu0
        %v320 = vpop.trf.xlu0
        %v321 = vpop.trf.xlu0
        %v322 = vpop.trf.xlu0
        %v323 = vpop.trf.xlu0
        %325 = vset.pattern.permute.xlu0 2
        %326 = vperm.xlu0 %325, %v288
        %v327 = vpop.permute.xlu0 %326
        %330 = vset.pattern.permute.xlu0 2
        %331 = vperm.xlu0 %330, %v290
        %v332 = vpop.permute.xlu0 %331
        %v334 = vperm.slane %v308, 0
        %v335 = vadd.f32 %v327, %v334
        %v336 = vadd.f32 %v332, %v334
        %v337 = vmul.f32 %v335, 0.2
        %v338 = vmul.f32 %v336, 0.2
        %v339 = vmax.f32 %v335, %v337
        %v340 = vmax.f32 %v336, %v338
        %v341 = vadd.f32 %v339, %v223
        %v342 = vadd.f32 %v340, %v224
        %vm343 = vcmask 130048
        %v344 = vsel %vm343, %v341, -inf
        %345 = vmax.xlane.f32.xlu0 %v344
        %v346 = vpop.xlane.xlu0 %345
        %v347 = vsel %vm343, %v342, -inf
        %348 = vmax.xlane.f32.xlu0 %v347
        %v349 = vpop.xlane.xlu0 %348
        %v350 = vsub.f32 %v341, %v346
        %v351 = vsub.f32 %v342, %v349
        %v352 = vmul.f32 %v350, 1.442695
        %v353 = vpow.pop %v352
        %v354 = vmul.f32 %v351, 1.442695
        %v355 = vpow.pop %v354
        %v356 = vpack.c.bf16 %v355, %v353
        %v357 = vpack.c.bf16 %v265, %v265
        %v358 = vpack.c.bf16 %v267, %v267
        %v361 = vunpack.c.l.b16 %v357
        %v362 = vunpack.c.l.b16 %v358
        %v363 = vpack.c.b16 %v362, %v361
        %vm364 = vcmask 261120
        %v367 = vsel %vm364, %v363, 1065369472
        %v370 = vsel %vm343, %v356, 0
        %372 = vmatpush.bf16.msra.mxu0 0
        %373 = vmatpush.bf16.msra.mxu0 0
        %374 = vmatpush.bf16.msra.mxu0 0
        %375 = vmatpush.bf16.msra.mxu0 0
        %376 = vmatpush.bf16.msra.mxu0 0
        %377 = vmatpush.bf16.msra.mxu0 0
        %378 = vmatpush.bf16.msra.mxu0 0
        %379 = vmatpush.bf16.msra.mxu0 %v367
        %380 = vmatmul.bf16.gmra.mxu0 %v370
        %v381 = vpop.f32.mrf.mxu0
        %v382 = vadd.f32 0.0, %v381
        %v383 = vpop.f32.mrf.mxu0
        %v384 = vadd.f32 0.0, %v383
        %385 = vdwg.mxu0
        %v386 = vrcp.pop %v382
        %v387 = vmul.f32 %v382, %v386
        %v388 = vsub.f32 1.0, %v387
        %v389 = vmul.f32 %v386, %v388
        %v390 = vadd.f32 %v386, %v389
        %vm391 = vweird.f32 %v382
        %vm392 = vweird.f32 %v386
        %vm393 = vmor %vm391, %vm392
        %v394 = vsel %vm393, %v386, %v390
        %v395 = vand.u32 2147483647, %v382
        %vm396 = vcmp.eq.f32.partialorder %v395, 8.507059e+37
        %v397 = vand.u32 %v382, 2147483648
        %v398 = vor.u32 1.1754944e-38, %v397
        %v399 = vsel %vm396, %v398, %v394
        %v400 = vrcp.pop %v384
        %v401 = vmul.f32 %v384, %v400
        %v402 = vsub.f32 1.0, %v401
        %v403 = vmul.f32 %v400, %v402
        %v404 = vadd.f32 %v400, %v403
        %vm405 = vweird.f32 %v384
        %vm406 = vweird.f32 %v400
        %vm407 = vmor %vm405, %vm406
        %v408 = vsel %vm407, %v400, %v404
        %v409 = vand.u32 2147483647, %v384
        %vm410 = vcmp.eq.f32.partialorder %v409, 8.507059e+37
        %v411 = vand.u32 %v384, 2147483648
        %v412 = vor.u32 1.1754944e-38, %v411
        %v413 = vsel %vm410, %v412, %v408
        %415 = vset.pattern.permute.xlu0 32
        %416 = vperm.xlu0 %415, %v399
        %v417 = vpop.permute.xlu0 %416
        %420 = vset.pattern.permute.xlu0 32
        %421 = vperm.xlu0 %420, %v413
        %v422 = vpop.permute.xlu0 %421
        %v424 = vmul.f32 %v382, %v417
        %v425 = vmul.f32 %v384, %v422
        %426 = vset.pattern.permute.xlu0 3
        %427 = vperm.xlu0 %426, %v288
        %v428 = vpop.permute.xlu0 %427
        %430 = vset.pattern.permute.xlu0 3
        %431 = vperm.xlu0 %430, %v290
        %v432 = vpop.permute.xlu0 %431
        %v434 = vperm.slane %v308, 1
        %v435 = vadd.f32 %v428, %v434
        %v436 = vadd.f32 %v432, %v434
        %v437 = vmul.f32 %v435, 0.2
        %v438 = vmul.f32 %v436, 0.2
        %v439 = vmax.f32 %v435, %v437
        %v440 = vmax.f32 %v436, %v438
        %v441 = vadd.f32 %v439, %v223
        %v442 = vadd.f32 %v440, %v224
        %v443 = vsel %vm343, %v441, -inf
        %444 = vmax.xlane.f32.xlu0 %v443
        %v445 = vpop.xlane.xlu0 %444
        %v446 = vsel %vm343, %v442, -inf
        %447 = vmax.xlane.f32.xlu0 %v446
        %v448 = vpop.xlane.xlu0 %447
        %v449 = vsub.f32 %v441, %v445
        %v450 = vsub.f32 %v442, %v448
        %v451 = vmul.f32 %v449, 1.442695
        %v452 = vpow.pop %v451
        %v453 = vmul.f32 %v450, 1.442695
        %v454 = vpow.pop %v453
        %v455 = vpack.c.bf16 %v454, %v452
        %456 = vrot.lane.b32.xlu0 %v363, 96
        %v457 = vpop.permute.xlu0 %456
        %v459 = vsel %vm364, %v457, 1065369472
        %v462 = vsel %vm343, %v455, 0
        %464 = vmatpush.bf16.msra.mxu0 0
        %465 = vmatpush.bf16.msra.mxu0 0
        %466 = vmatpush.bf16.msra.mxu0 0
        %467 = vmatpush.bf16.msra.mxu0 0
        %468 = vmatpush.bf16.msra.mxu0 0
        %469 = vmatpush.bf16.msra.mxu0 0
        %470 = vmatpush.bf16.msra.mxu0 0
        %471 = vmatpush.bf16.msra.mxu0 %v459
        %472 = vmatmul.bf16.gmra.mxu0 %v462
        %v473 = vpop.f32.mrf.mxu0
        %v474 = vadd.f32 0.0, %v473
        %v475 = vpop.f32.mrf.mxu0
        %v476 = vadd.f32 0.0, %v475
        %477 = vdwg.mxu0
        %v478 = vrcp.pop %v474
        %v479 = vmul.f32 %v474, %v478
        %v480 = vsub.f32 1.0, %v479
        %v481 = vmul.f32 %v478, %v480
        %v482 = vadd.f32 %v478, %v481
        %vm483 = vweird.f32 %v474
        %vm484 = vweird.f32 %v478
        %vm485 = vmor %vm483, %vm484
        %v486 = vsel %vm485, %v478, %v482
        %v487 = vand.u32 2147483647, %v474
        %vm488 = vcmp.eq.f32.partialorder %v487, 8.507059e+37
        %v489 = vand.u32 %v474, 2147483648
        %v490 = vor.u32 1.1754944e-38, %v489
        %v491 = vsel %vm488, %v490, %v486
        %v492 = vrcp.pop %v476
        %v493 = vmul.f32 %v476, %v492
        %v494 = vsub.f32 1.0, %v493
        %v495 = vmul.f32 %v492, %v494
        %v496 = vadd.f32 %v492, %v495
        %vm497 = vweird.f32 %v476
        %vm498 = vweird.f32 %v492
        %vm499 = vmor %vm497, %vm498
        %v500 = vsel %vm499, %v492, %v496
        %v501 = vand.u32 2147483647, %v476
        %vm502 = vcmp.eq.f32.partialorder %v501, 8.507059e+37
        %v503 = vand.u32 %v476, 2147483648
        %v504 = vor.u32 1.1754944e-38, %v503
        %v505 = vsel %vm502, %v504, %v500
        %507 = vset.pattern.permute.xlu0 32
        %508 = vperm.xlu0 %507, %v491
        %v509 = vpop.permute.xlu0 %508
        %512 = vset.pattern.permute.xlu0 32
        %513 = vperm.xlu0 %512, %v505
        %v514 = vpop.permute.xlu0 %513
        %v516 = vmul.f32 %v474, %v509
        %v517 = vmul.f32 %v476, %v514
        %520 = vrot.lane.b32.xlu0 %v516, 32
        %v521 = vpop.permute.xlu0 %520
        %522 = vrot.lane.b32.xlu0 %v517, 32
        %v523 = vpop.permute.xlu0 %522
        %v526 = vsel %vm364, %v424, %v521
        %v527 = vsel %vm364, %v425, %v523
        %v528 = vperm.slane %v234, 0
        %v529 = vadd.f32 %v526, %v528
        %v530 = vadd.f32 %v527, %v528
        %v531 = vmax.f32 %v529, 0.0
        %v532 = vmax.f32 %v530, 0.0
        %v533 = vpack.c.bf16 %v532, %v531
        %v534 = vpack.c.bf16 %v236, %v235
        %v535 = vpack.c.bf16 %v238, %v237
        %v536 = vpack.c.bf16 %v240, %v239
        %v537 = vpack.c.bf16 %v242, %v241
        %v539 = vsel %vm274, %v533, 0
        %541 = vmatpush.bf16.msra.mxu0 0
        %542 = vmatpush.bf16.msra.mxu0 0
        %543 = vmatpush.bf16.msra.mxu0 0
        %544 = vmatpush.bf16.msra.mxu0 0
        %545 = vmatpush.bf16.msra.mxu0 %v537
        %546 = vmatpush.bf16.msra.mxu0 %v536
        %547 = vmatpush.bf16.msra.mxu0 %v535
        %548 = vmatpush.bf16.msra.mxu0 %v534
        %549 = vmatmul.bf16.gmra.mxu0 %v539
        %v550 = vpop.f32.mrf.mxu0
        %v551 = vadd.f32 0.0, %v550
        %v552 = vpop.f32.mrf.mxu0
        %v553 = vadd.f32 0.0, %v552
        %554 = vdwg.mxu0
        %556 = vset.pattern.permute.xlu0 0
        %557 = vperm.xlu0 %556, %v551
        %v558 = vpop.permute.xlu0 %557
        %561 = vset.pattern.permute.xlu0 0
        %562 = vperm.xlu0 %561, %v553
        %v563 = vpop.permute.xlu0 %562
        %v565 = vperm.slane %v243, 0
        %v566 = vmul.f32 %v558, %v565
        %v567 = vmul.f32 %v563, %v565
        %568 = vxpose.xlu0.b32.start [1/16] %v566, 128
        %569 = vxpose.xlu0.b32.cont [2/16] %v567, 128
        %570 = vxpose.xlu0.b32.cont [3/16] 0.0, 128
        %571 = vxpose.xlu0.b32.cont [4/16] 0.0, 128
        %572 = vxpose.xlu0.b32.cont [5/16] 0.0, 128
        %573 = vxpose.xlu0.b32.cont [6/16] 0.0, 128
        %574 = vxpose.xlu0.b32.cont [7/16] 0.0, 128
        %575 = vxpose.xlu0.b32.cont [8/16] 0.0, 128
        %576 = vxpose.xlu0.b32.cont [9/16] 0.0, 128
        %577 = vxpose.xlu0.b32.cont [10/16] 0.0, 128
        %578 = vxpose.xlu0.b32.cont [11/16] 0.0, 128
        %579 = vxpose.xlu0.b32.cont [12/16] 0.0, 128
        %580 = vxpose.xlu0.b32.cont [13/16] 0.0, 128
        %581 = vxpose.xlu0.b32.cont [14/16] 0.0, 128
        %582 = vxpose.xlu0.b32.cont [15/16] 0.0, 128
        %583 = vxpose.xlu0.b32.end [16/16] 0.0, 128
        %v584 = vpop.trf.xlu0
        %v585 = vpop.trf.xlu0
        %v586 = vpop.trf.xlu0
        %v587 = vpop.trf.xlu0
        %v588 = vpop.trf.xlu0
        %v589 = vpop.trf.xlu0
        %v590 = vpop.trf.xlu0
        %v591 = vpop.trf.xlu0
        %v592 = vpop.trf.xlu0
        %v593 = vpop.trf.xlu0
        %v594 = vpop.trf.xlu0
        %v595 = vpop.trf.xlu0
        %v596 = vpop.trf.xlu0
        %v597 = vpop.trf.xlu0
        %v598 = vpop.trf.xlu0
        %v599 = vpop.trf.xlu0
        %601 = vset.pattern.permute.xlu0 1
        %602 = vperm.xlu0 %601, %v566
        %v603 = vpop.permute.xlu0 %602
        %606 = vset.pattern.permute.xlu0 1
        %607 = vperm.xlu0 %606, %v567
        %v608 = vpop.permute.xlu0 %607
        %v610 = vperm.slane %v584, 0
        %v611 = vadd.f32 %v603, %v610
        %v612 = vadd.f32 %v608, %v610
        %v613 = vmul.f32 %v611, 0.2
        %v614 = vmul.f32 %v612, 0.2
        %v615 = vmax.f32 %v611, %v613
        %v616 = vmax.f32 %v612, %v614
        %v617 = vadd.f32 %v615, %v223
        %v618 = vadd.f32 %v616, %v224
        %v619 = vsel %vm343, %v617, -inf
        %620 = vmax.xlane.f32.xlu0 %v619
        %v621 = vpop.xlane.xlu0 %620
        %v622 = vsel %vm343, %v618, -inf
        %623 = vmax.xlane.f32.xlu0 %v622
        %v624 = vpop.xlane.xlu0 %623
        %v625 = vsub.f32 %v617, %v621
        %v626 = vsub.f32 %v618, %v624
        %v627 = vmul.f32 %v625, 1.442695
        %v628 = vpow.pop %v627
        %v629 = vmul.f32 %v626, 1.442695
        %v630 = vpow.pop %v629
        %v631 = vpack.c.bf16 %v630, %v628
        %v632 = vpack.c.bf16 %v551, %v551
        %v633 = vpack.c.bf16 %v553, %v553
        %v636 = vunpack.c.l.b16 %v632
        %v637 = vunpack.c.l.b16 %v633
        %v638 = vpack.c.b16 %v637, %v636
        %vm639 = vcmask 7168
        %v641 = vsel %vm639, %v638, 1065369472
        %v644 = vsel %vm343, %v631, 0
        %646 = vmatpush.bf16.msra.mxu0 0
        %647 = vmatpush.bf16.msra.mxu0 0
        %648 = vmatpush.bf16.msra.mxu0 0
        %649 = vmatpush.bf16.msra.mxu0 0
        %650 = vmatpush.bf16.msra.mxu0 0
        %651 = vmatpush.bf16.msra.mxu0 0
        %652 = vmatpush.bf16.msra.mxu0 0
        %653 = vmatpush.bf16.msra.mxu0 %v641
        %654 = vmatmul.bf16.gmra.mxu0 %v644
        %v655 = vpop.f32.mrf.mxu0
        %v656 = vadd.f32 0.0, %v655
        %v657 = vpop.f32.mrf.mxu0
        %v658 = vadd.f32 0.0, %v657
        %659 = vdwg.mxu0
        %v660 = vrcp.pop %v656
        %v661 = vrcp.pop %v658
        %664 = vrot.lane.b32.xlu0 %v660, 127
        %v665 = vpop.permute.xlu0 %664
        %666 = vrot.lane.b32.xlu0 %v661, 127
        %v667 = vpop.permute.xlu0 %666
        %v670 = vmul.f32 %v656, %v665
        %v671 = vmul.f32 %v658, %v667
        %v672 = vperm.slane %v244, 0
        %v673 = vadd.f32 %v670, %v672
        %v674 = vadd.f32 %v671, %v672
        %v675 = vxor.u32 %v673, 2147483648
        %v676 = vxor.u32 %v674, 2147483648
        %v677 = vmul.f32 %v675, 1.442695
        %v678 = vpow.pop %v677
        %v679 = vmul.f32 %v676, 1.442695
        %v680 = vpow.pop %v679
        %v681 = vadd.f32 %v678, 1.0
        %v682 = vadd.f32 %v680, 1.0
        %v683 = vrcp.pop %v681
        %v684 = vmul.f32 %v681, %v683
        %v685 = vsub.f32 1.0, %v684
        %v686 = vmul.f32 %v683, %v685
        %v687 = vadd.f32 %v683, %v686
        %vm688 = vweird.f32 %v681
        %vm689 = vweird.f32 %v683
        %vm690 = vmor %vm688, %vm689
        %v691 = vsel %vm690, %v683, %v687
        %v692 = vand.u32 2147483647, %v681
        %vm693 = vcmp.eq.f32.partialorder %v692, 8.507059e+37
        %v694 = vand.u32 %v681, 2147483648
        %v695 = vor.u32 1.1754944e-38, %v694
        %v696 = vsel %vm693, %v695, %v691
        %v697 = vmul.f32 1.0, %v696
        %v698 = vrcp.pop %v682
        %v699 = vmul.f32 %v682, %v698
        %v700 = vsub.f32 1.0, %v699
        %v701 = vmul.f32 %v698, %v700
        %v702 = vadd.f32 %v698, %v701
        %vm703 = vweird.f32 %v682
        %vm704 = vweird.f32 %v698
        %vm705 = vmor %vm703, %vm704
        %v706 = vsel %vm705, %v698, %v702
        %v707 = vand.u32 2147483647, %v682
        %vm708 = vcmp.eq.f32.partialorder %v707, 8.507059e+37
        %v709 = vand.u32 %v682, 2147483648
        %v710 = vor.u32 1.1754944e-38, %v709
        %v711 = vsel %vm708, %v710, %v706
        %v712 = vmul.f32 1.0, %v711
        %713 = vst.msk [vmem:[%s212] sm:$0xff] %vm639, %v697
        %714 = vst.msk [vmem:[%s212 + $0x8] sm:$0xff] %vm639, %v712
        %p715 = scmp.lt.s32.totalorder %s17, 7
        %s716 = scalar_select %p715, %s17, 7
        %s717 = smul.addr %s716, 2
        %s718 = smul.addr %s717, 8
        %s719 = scalar_lea.vmem %s3, %s718
        // Predicated region
        $region37: #{tpu_custom_call.1} parent=31 // pred_check
          %p720 = pneg %p108
        $region38: #{tpu_custom_call.1} parent=31 // pred_check_branch
          %722 = sbr.rel (%p720) target = $region40
        $region39: #{tpu_custom_call.1} parent=31 // pred_region
          _
        $region40: #{tpu_custom_call.1} parent=31 // pred_fallthru
          _
      $region32: #{tpu_custom_call.1} parent=5 // pred_fallthru
        _
      %p723 = scmp.le.s32.totalorder 2, %s12
      // Predicated region
      $region41: #{tpu_custom_call.1} parent=5 // pred_check
        %p724 = pneg %p723
      $region42: #{tpu_custom_call.1} parent=5 // pred_check_branch
        %726 = sbr.rel (%p724) target = $region44
      $region43: #{tpu_custom_call.1} parent=5 // pred_region
        %s727 = ssub.s32 %s12, 2
        // Predicated region
        $region45: #{tpu_custom_call.1} parent=43 // pred_check
          %p728 = pneg %p114
        $region46: #{tpu_custom_call.1} parent=43 // pred_check_branch
          %730 = sbr.rel (%p728) target = $region48
        $region47: #{tpu_custom_call.1} parent=43 // pred_region
          %p731 = scmp.lt.s32.totalorder %s18, 7
          %s732 = scalar_select %p731, %s18, 7
          %s733 = smul.addr %s732, 2
          %s734 = smul.addr %s733, 8
          %s735 = scalar_lea.vmem %s3, %s734
        $region48: #{tpu_custom_call.1} parent=43 // pred_fallthru
          _
      $region44: #{tpu_custom_call.1} parent=5 // pred_fallthru
        _
    $region6: #{tpu_custom_call.1} parent=1 // loop_footer
      %s16 = sadd.s32 1, %s12
    $region7: #{tpu_custom_call.1} parent=1 // loop_footer_branch
      %11 = sbr.rel target = $region3
    $region8: #{tpu_custom_call.1} parent=1 // loop_exit
      _
    %736 = vsyncpa [#allocation3], 1
    %s737 = scalar_lea.sflag [#allocation3], 1
    %738 = vsyncpa %s737, 1

</llo_original>
